<compile_context>
chip_gen: v7x
topology: tpu7x:2x2x1
jax: 0.10.0
libtpu: 0.0.40
codegen_flags: <defaults>
</compile_context>

<pallas_src>
import math

import jax
import jax.numpy as jnp
from jax.experimental import pallas as pl
from jax.experimental.pallas import tpu as pltpu


def _fused_kernel(x_ref, kh_ref, ac_ref, o_ref):
    # x_ref: (TB, 2F) VMEM; kh_ref: (1, F) VMEM; ac_ref: (2,) SMEM; o_ref: (TB, F).
    F = kh_ref.shape[1]
    kh = kh_ref[...]                    # 0.5 * k, broadcasts over the row tile
    a = ac_ref[0]                       # sum(w1 * w2)
    c = ac_ref[1]                       # b2 + sum(b1 * w2)

    # sig(v) = 1 - tanh(0.5*k*v); lane-aligned static slices (F % 128 == 0).
    t1 = jnp.tanh(kh * x_ref[:, :F])
    t2 = jnp.tanh(kh * x_ref[:, F:])
    s2 = 1.0 - t2
    # delta = s2 - s1 = t1 - t2; out = (A*delta + C) * s2
    o_ref[...] = ((t1 - t2) * a + c) * s2


def _split_kernel(s_ref, n_ref, kh_ref, ac_ref, o_ref):
    # Fallback when F % 128 != 0 (inputs pre-split in the wrapper).
    kh = kh_ref[...]
    a = ac_ref[0]
    c = ac_ref[1]
    t1 = jnp.tanh(kh * s_ref[...])
    t2 = jnp.tanh(kh * n_ref[...])
    s2 = 1.0 - t2
    o_ref[...] = ((t1 - t2) * a + c) * s2


def _round_up(x, m):
    return ((x + m - 1) // m) * m


def spatial_sense_block(x, k, w1, b1, w2, b2, *, block_rows=2048):
    """x: (B, 2F) f32, k: (F,) f32, w1/b1/w2: (8,) f32, b2: (1,) f32."""
    B, twoF = x.shape
    F = twoF // 2
    assert k.shape == (F,)

    # sig(v) = 1 - tanh(0.5*k*v): precompute half-k once, ship as a (1, F) row.
    k_half = (0.5 * k).reshape(1, F).astype(x.dtype)

    # Collapse the per-element Linear(1->8)->Linear(8->1) to the exact affine map
    # A*delta + C with A = sum(w1*w2), C = b2 + sum(b1*w2) -> two SMEM scalars.
    a = jnp.sum(w1 * w2)
    c = b2[0] + jnp.sum(b1 * w2)
    ac = jnp.stack([a, c]).astype(jnp.float32)

    # Row tile: cap at block_rows, but guarantee >= 2 grid steps whenever B > 8 so
    # the "parallel" batch axis can be sharded across v7x's two TensorCores.
    if B <= 8:
        tb = B
    else:
        tb = min(block_rows, max(8, _round_up(pl.cdiv(B, 2), 8)))
    grid = (pl.cdiv(B, tb),)

    compiler_params = pltpu.CompilerParams(dimension_semantics=("parallel",))

    if F % 128 == 0:
        # Fused path: one contiguous (tb, 2F) DMA per tile; no wrapper-side HBM copies.
        return pl.pallas_call(
            _fused_kernel,
            out_shape=jax.ShapeDtypeStruct((B, F), x.dtype),
            grid=grid,
            in_specs=[
                pl.BlockSpec((tb, twoF), lambda i: (i, 0)),
                pl.BlockSpec((1, F), lambda i: (0, 0)),
                pl.BlockSpec((2,), lambda i: (0,),
                             memory_space=pltpu.MemorySpace.SMEM),
            ],
            out_specs=pl.BlockSpec((tb, F), lambda i: (i, 0)),
            compiler_params=compiler_params,
        )(x, k_half, ac)

    # TODO(synk): F not a multiple of 128 -> fall back to wrapper-side split so every
    # in-kernel tile stays a full-width (lane-padded) block; costs one extra HBM copy.
    sample = x[:, :F]
    sample_next = x[:, F:]
    return pl.pallas_call(
        _split_kernel,
        out_shape=jax.ShapeDtypeStruct((B, F), x.dtype),
        grid=grid,
        in_specs=[
            pl.BlockSpec((tb, F), lambda i: (i, 0)),
            pl.BlockSpec((tb, F), lambda i: (i, 0)),
            pl.BlockSpec((1, F), lambda i: (0, 0)),
            pl.BlockSpec((2,), lambda i: (0,),
                         memory_space=pltpu.MemorySpace.SMEM),
        ],
        out_specs=pl.BlockSpec((tb, F), lambda i: (i, 0)),
        compiler_params=compiler_params,
    )(sample, sample_next, k_half, ac)


def reference(x, k, W1, b1, W2, b2):
    """Pure-JAX replica of the PyTorch forward (for verification)."""
    B = x.shape[0]
    F = x.shape[1] // 2
    sample, sample_next = x[:, :F], x[:, F:]
    sig = lambda v: (-1.0 / (1.0 + jnp.exp(-k * v)) + 1.0) * 2.0
    s1, s2 = sig(sample), sig(sample_next)
    delta = (s2 - s1).reshape(-1, 1)
    h = delta @ W1.T + b1        # Linear(1, 8)
    d = h @ W2.T + b2            # Linear(8, 1)
    d = d.reshape(B, F)
    return d * s2


if __name__ == "__main__":
    num_features = 128          # feature_size == num_features (required by k broadcast)
    sensing_range = 10.0

    key = jax.random.PRNGKey(0)
    kx, kw1, kw2, kx2 = jax.random.split(key, 4)

    # k init: inverse_sigmoid(sensing_range, 0.01) = -1/sr * log(0.01 / (2 - 0.01))
    k_init = -1.0 / sensing_range * math.log(0.01 / (2.0 - 0.01))
    k = jnp.full((num_features,), k_init, dtype=jnp.float32)

    # delta_proj params: xavier_uniform weights, zero biases (deterministic via PRNGKey(0))
    bound1 = math.sqrt(6.0 / (1 + 8))   # Linear(1, 8): weight (8, 1)
    W1 = jax.random.uniform(kw1, (8, 1), jnp.float32, minval=-bound1, maxval=bound1)
    b1 = jnp.zeros((8,), jnp.float32)
    bound2 = math.sqrt(6.0 / (8 + 1))   # Linear(8, 1): weight (1, 8)
    W2 = jax.random.uniform(kw2, (1, 8), jnp.float32, minval=-bound2, maxval=bound2)
    b2 = jnp.zeros((1,), jnp.float32)

    # --- small-shape check (B=8, single grid step, fused path) ---
    B = 8
    x = jax.random.uniform(kx, (B, 2 * num_features), jnp.float32,
                           minval=0.0, maxval=sensing_range)
    out = spatial_sense_block(x, k, W1.reshape(-1), b1, W2.reshape(-1), b2)
    out = jax.block_until_ready(out)
    ref = reference(x, k, W1, b1, W2, b2)
    assert out.shape == (B, num_features)
    assert jnp.allclose(out, ref, rtol=1e-5, atol=1e-5), "mismatch vs reference (B=8)"

    # --- batched check: exercises >=2 grid steps (megacore split) + partial last block ---
    B2 = 600
    x2 = jax.random.uniform(kx2, (B2, 2 * num_features), jnp.float32,
                            minval=0.0, maxval=sensing_range)
    out2 = spatial_sense_block(x2, k, W1.reshape(-1), b1, W2.reshape(-1), b2)
    out2 = jax.block_until_ready(out2)
    ref2 = reference(x2, k, W1, b1, W2, b2)
    assert out2.shape == (B2, num_features)
    assert jnp.allclose(out2, ref2, rtol=1e-5, atol=1e-5), "mismatch vs reference (B=600)"

    print("KERNEL_OK")
</pallas_src>

<mosaic_0001>
module attributes {stable_mosaic.version = 11 : i64} {
  func.func @_fused_kernel(%arg0: i32, %arg1: memref<8x256xf32, #tpu.memory_space<vmem>>, %arg2: memref<1x128xf32, #tpu.memory_space<vmem>>, %arg3: memref<2xf32, #tpu.memory_space<smem>>, %arg4: memref<8x128xf32, #tpu.memory_space<vmem>>) attributes {dimension_semantics = [#tpu.dimension_semantics<parallel>], iteration_bounds = array<i64: 1>, scalar_prefetch = 0 : i64, scratch_operands = 0 : i64, tpu.core_type = #tpu.core_type<tc>, window_params = [{transform_indices = @transform_0, window_bounds = array<i64: 8, 256>}, {pipeline_mode = #tpu.pipeline_mode<synchronous>, transform_indices = @transform_1, window_bounds = array<i64: 1, 128>}, {transform_indices = @transform_2, window_bounds = array<i64: 2>}, {transform_indices = @transform_3, window_bounds = array<i64: 8, 128>}]} {
    %c0 = arith.constant 0 : index
    %c0_0 = arith.constant 0 : index
    %0 = vector.load %arg2[%c0, %c0_0] : memref<1x128xf32, #tpu.memory_space<vmem>>, vector<1x128xf32>
    %c0_1 = arith.constant 0 : index
    %1 = memref.load %arg3[%c0_1] : memref<2xf32, #tpu.memory_space<smem>>
    %c1 = arith.constant 1 : index
    %2 = memref.load %arg3[%c1] : memref<2xf32, #tpu.memory_space<smem>>
    %c0_2 = arith.constant 0 : index
    %c0_3 = arith.constant 0 : index
    %3 = vector.load %arg1[%c0_2, %c0_3] : memref<8x256xf32, #tpu.memory_space<vmem>>, vector<8x128xf32>
    %4 = vector.broadcast %0 : vector<1x128xf32> to vector<8x128xf32>
    %5 = arith.mulf %4, %3 : vector<8x128xf32>
    %6 = math.tanh %5 : vector<8x128xf32>
    %c0_4 = arith.constant 0 : index
    %c128 = arith.constant 128 : index
    %7 = vector.load %arg1[%c0_4, %c128] : memref<8x256xf32, #tpu.memory_space<vmem>>, vector<8x128xf32>
    %8 = vector.broadcast %0 : vector<1x128xf32> to vector<8x128xf32>
    %9 = arith.mulf %8, %7 : vector<8x128xf32>
    %10 = math.tanh %9 : vector<8x128xf32>
    %cst = arith.constant 1.000000e+00 : f32
    %11 = vector.broadcast %cst : f32 to vector<8x128xf32>
    %12 = arith.subf %11, %10 : vector<8x128xf32>
    %13 = arith.subf %6, %10 : vector<8x128xf32>
    %14 = vector.broadcast %1 : f32 to vector<8x128xf32>
    %15 = arith.mulf %13, %14 : vector<8x128xf32>
    %16 = vector.broadcast %2 : f32 to vector<8x128xf32>
    %17 = arith.addf %15, %16 : vector<8x128xf32>
    %18 = arith.mulf %17, %12 : vector<8x128xf32>
    %c0_5 = arith.constant 0 : index
    %c0_6 = arith.constant 0 : index
    %19 = vector.load %arg4[%c0_5, %c0_6] : memref<8x128xf32, #tpu.memory_space<vmem>>, vector<8x128xf32>
    tpu.vector_store %arg4[%c0_5, %c0_6], %18 {strides = array<i32>} : memref<8x128xf32, #tpu.memory_space<vmem>>, vector<8x128xf32>,
    return
  }
  func.func @transform_0(%arg0: i32) -> (i32, i32) {
    %c0_i32 = arith.constant 0 : i32
    %c0_i32_0 = arith.constant 0 : i32
    return %arg0, %c0_i32 : i32, i32
  }
  func.func @transform_1(%arg0: i32) -> (i32, i32) {
    %c0_i32 = arith.constant 0 : i32
    %c0_i32_0 = arith.constant 0 : i32
    %c0_i32_1 = arith.constant 0 : i32
    return %c0_i32, %c0_i32_0 : i32, i32
  }
  func.func @transform_2(%arg0: i32) -> i32 {
    %c0_i32 = arith.constant 0 : i32
    %c0_i32_0 = arith.constant 0 : i32
    return %c0_i32 : i32
  }
  func.func @transform_3(%arg0: i32) -> (i32, i32) {
    %c0_i32 = arith.constant 0 : i32
    %c0_i32_0 = arith.constant 0 : i32
    return %arg0, %c0_i32 : i32, i32
  }
}

</mosaic_0001>

<llo_original>
// kernel: tpu_custom_call.1
$region0: #{tpu_custom_call.1}
  #allocation0 [shape = 'u32[]', space=smem, size = 0x4, offset = 0x4, fixed_abs, tag = 'smem constant byte address 0x4 - core index']
  #allocation1 [shape = 'u32[144,128]{1,0:T(1,128)}', space=vmem, size = 0x12000, scoped, tag = 'internal scratch']
  %s0 = inlined_call_operand.hbm [shape: f32[8,256], index: 0, kind: input, shape index: {}]
  %s1 = inlined_call_operand.vmem [shape: f32[1,128], index: 1, kind: input, shape index: {}]
  %s2 = inlined_call_operand.vmem [shape: f32[2], index: 2, kind: input, shape index: {}]
  %s3 = inlined_call_operand.hbm [shape: f32[8,128], index: 3, kind: output, shape index: {}]
  %s4 = sld [smem:[#allocation0]]
  $region30: #{tpu_custom_call.1} parent=0
    _
  %s6 = ssub.s32 1, %s4
  %s7 = scalar_select 0, %s6, %s4
  $region1: #{tpu_custom_call.1} parent=0
    #allocation2 [shape = 'u8[8192]{0}', space=vmem, size = 0x2000, scoped, tag = 'input window, operand 0, single buffered']
    #allocation3 [shape = 's32[1]{0}', space=sflag, size = 0x4, scoped, tag = 'scoped memory for tpu_custom_call.1']
    #allocation4 [shape = 's32[1]{0}', space=sflag, size = 0x4, scoped, tag = 'scoped memory for tpu_custom_call.1']
    #allocation5 [shape = 's32[1]{0}', space=sflag, size = 0x4, scoped, tag = 'scoped memory for tpu_custom_call.1']
    #allocation6 [shape = 'u8[512]{0}', space=smem, size = 0x200, scoped, tag = 'input window, operand 2, single buffered']
    #allocation7 [shape = 'u8[4096]{0}', space=vmem, size = 0x1000, scoped, tag = 'output window, operand 0, single buffered']
    %8 = vsyncpa [#allocation3], 0
    %9 = vsyncpa [#allocation5], 0
    %10 = vsyncpa [#allocation4], 0
    // Predicated region
    $region2: #{tpu_custom_call.1} parent=1 // pred_check
      _
    $region3: #{tpu_custom_call.1} parent=1 // pred_check_branch
      %12 = sbr.rel (0) target = $region5
    $region4: #{tpu_custom_call.1} parent=1 // pred_region
      %s14 = ssub.s32 256, 256
      %15 = vsyncadd [#allocation3], %s14
      %s17 = sshll.u32 [#allocation2], 4
      %s18 = int_to_ptr.vmem [resolvable:$true] %s17
      %20 = dma.hbm_to_vmem [thread:$0]  %s0, 256, %s18, [#allocation3]
    $region5: #{tpu_custom_call.1} parent=1 // pred_fallthru
      _
    // Predicated region
    $region6: #{tpu_custom_call.1} parent=1 // pred_check
      _
    $region7: #{tpu_custom_call.1} parent=1 // pred_check_branch
      %22 = sbr.rel (0) target = $region9
    $region8: #{tpu_custom_call.1} parent=1 // pred_region
      _
    $region9: #{tpu_custom_call.1} parent=1 // pred_fallthru
      _
    // Predicated region
    $region10: #{tpu_custom_call.1} parent=1 // pred_check
      _
    $region11: #{tpu_custom_call.1} parent=1 // pred_check_branch
      %24 = sbr.rel (0) target = $region13
    $region12: #{tpu_custom_call.1} parent=1 // pred_region
      %s26 = ssub.s32 16, 16
      %27 = vsyncadd [#allocation5], %s26
      %s29 = sshll.u32 %s2, 4
      %s30 = int_to_ptr.vmem [resolvable:$true] %s29
      %32 = dma.vmem_to_smem %s30, 16, [#allocation6], [#allocation5]
    $region13: #{tpu_custom_call.1} parent=1 // pred_fallthru
      _
    // Predicated region
    $region14: #{tpu_custom_call.1} parent=1 // pred_check
      _
    $region15: #{tpu_custom_call.1} parent=1 // pred_check_branch
      %34 = sbr.rel (0) target = $region17
    $region16: #{tpu_custom_call.1} parent=1 // pred_region
      %35 = dma.done [#allocation3], 256
    $region17: #{tpu_custom_call.1} parent=1 // pred_fallthru
      _
    // Predicated region
    $region18: #{tpu_custom_call.1} parent=1 // pred_check
      _
    $region19: #{tpu_custom_call.1} parent=1 // pred_check_branch
      %37 = sbr.rel (0) target = $region21
    $region20: #{tpu_custom_call.1} parent=1 // pred_region
      %38 = dma.done [#allocation5], 16
    $region21: #{tpu_custom_call.1} parent=1 // pred_fallthru
      _
    %39 = sfence
    %v40 = vld [vmem:[%s1] sm:$0x1]
    %s41 = sld [smem:[#allocation6]]
    %s42 = sld [smem:[#allocation6 + $0x1]]
    %v43 = vld [vmem:[#allocation2] sm:$0xff]
    %v45 = vlaneseq
    %v46 = vshrl.u32 %v45, 7
    %v47 = vsub.s32 0, %v46
    %v48 = vrot.slane %v40, %v47
    %v50 = vmul.f32 %v48, %v43
    %v51 = vtanh.pop %v50
    %v52 = vld [vmem:[#allocation2 + $0x8] sm:$0xff]
    %v53 = vmul.f32 %v48, %v52
    %v54 = vtanh.pop %v53
    %v55 = vsub.f32 1.0, %v54
    %v56 = vsub.f32 %v51, %v54
    %v57 = vstv %s41
    %v58 = vmul.f32 %v56, %v57
    %v59 = vstv %s42
    %v60 = vadd.f32 %v58, %v59
    %v61 = vmul.f32 %v60, %v55
    %62 = vst [vmem:[#allocation7] sm:$0xff] %v61
    // Predicated region
    $region22: #{tpu_custom_call.1} parent=1 // pred_check
      _
    $region23: #{tpu_custom_call.1} parent=1 // pred_check_branch
      %64 = sbr.rel (0) target = $region25
    $region24: #{tpu_custom_call.1} parent=1 // pred_region
      %s66 = ssub.s32 128, 128
      %67 = vsyncadd [#allocation4], %s66
      %s69 = sshll.u32 [#allocation7], 4
      %s70 = int_to_ptr.vmem [resolvable:$true] %s69
      %72 = dma.vmem_to_hbm [thread:$0]  %s70, 128, %s3, [#allocation4]
    $region25: #{tpu_custom_call.1} parent=1 // pred_fallthru
      _
    // Predicated region
    $region26: #{tpu_custom_call.1} parent=1 // pred_check
      _
    $region27: #{tpu_custom_call.1} parent=1 // pred_check_branch
      %74 = sbr.rel (0) target = $region29
    $region28: #{tpu_custom_call.1} parent=1 // pred_region
      %75 = dma.done [#allocation4], 128
    $region29: #{tpu_custom_call.1} parent=1 // pred_fallthru
      _
    %76 = vsyncpa [#allocation3], 1
    %77 = vsyncpa [#allocation4], 1
    %78 = vsyncpa [#allocation5], 1

</llo_original>
